<compile_context>
chip_gen: v5e
topology: v5e:2x2
jax: 0.10.0
libtpu: 0.0.40
codegen_flags: <defaults>
</compile_context>

<pallas_src>
import math

import jax
import jax.numpy as jnp
import numpy as np
from jax import lax
from jax.experimental import pallas as pl
from jax.experimental.pallas import tpu as pltpu

BETA = 1.0
BN_EPS = 1e-5


# ------------------------------ in-kernel math --------------------------------
def _erf_approx(x):
    # Abramowitz & Stegun 7.1.26, max abs error ~1.5e-7 (well under the 1e-4 tol).
    a1, a2, a3, a4, a5 = (0.254829592, -0.284496736, 1.421413741,
                          -1.453152027, 1.061405429)
    p = 0.3275911
    ax = jnp.abs(x)
    t = 1.0 / (1.0 + p * ax)
    poly = ((((a5 * t + a4) * t + a3) * t + a2) * t + a1) * t
    y = 1.0 - poly * jnp.exp(-ax * ax)          # exp dispatches to the EUP
    return jnp.where(x < 0.0, -y, y)


def _gelu_exact(x):
    # 0.5 * x * (1 + erf(x / sqrt(2))) -- same definition as torch.nn.GELU().
    return 0.5 * x * (1.0 + _erf_approx(x * np.float32(1.0 / np.sqrt(2.0))))


# ----------------------------------- kernel -----------------------------------
def resblock_kernel(x_ref, mm1_ref, mp1_ref,
                    w1_ref, b1_ref, w2_ref, b2_ref, wr_ref, br_ref,
                    o_ref):
    x = x_ref[...]                       # (C_in_p, T) f32, T = nb*L lanes
    T = x.shape[1]
    mm1 = mm1_ref[...]                   # (1, T): 1 where x[l-1] is in-sequence
    mp1 = mp1_ref[...]                   # (1, T): 1 where x[l+1] is in-sequence

    def taps(z):
        # [z_{l-1}; z_l; z_{l+1}] stacked on the sublane axis.  pltpu.roll runs on
        # the XLU (separate slot); boundary zeroing is one VPU mul per shifted tap.
        z_m1 = pltpu.roll(z, shift=1, axis=1) * mm1
        z_p1 = pltpu.roll(z, shift=T - 1, axis=1) * mp1    # roll by -1 == roll by T-1
        return jnp.concatenate([z_m1, z, z_p1], axis=0)    # (3*C, T), tile-aligned

    # main branch: conv1 (+BN1 folded) -> GELU -> conv2 (+BN2 folded)
    y = jnp.dot(w1_ref[...], taps(x), preferred_element_type=jnp.float32)
    y = _gelu_exact(y + b1_ref[...])
    r = jnp.dot(w2_ref[...], taps(y), preferred_element_type=jnp.float32)
    r = r + b2_ref[...]

    # skip branch: 1x1 conv (+BN folded)
    sk = jnp.dot(wr_ref[...], x, preferred_element_type=jnp.float32) + br_ref[...]

    res = r if BETA == 1.0 else BETA * r          # trace-time fold of beta == 1
    o_ref[...] = _gelu_exact(sk + res).astype(o_ref.dtype)


# ---------------------------------- wrapper ------------------------------------
def resblock_pallas(x, packed, num_outs):
    """x: (N, C_in, L) float32 -> (N, num_outs, L) float32."""
    N, C_in, L = x.shape
    w1f, b1f, w2f, b2f, wrf, brf = packed
    C_out_p = w1f.shape[0]
    C_in_p = w1f.shape[1] // 3

    # Fold the batch into the lane axis.  Each grid step processes `nb` whole
    # sequences, so tile lane width is a multiple of L (sequence boundaries
    # coincide with tile boundaries -> the masks fully handle the conv halo)
    # and of 128 (dense, unmasked stores).
    nb = math.lcm(L, 128) // L
    tile_lanes = nb * L
    grid_n = max(2, pl.cdiv(N, nb))      # >=2 parallel steps so v7x's 2 TCs get work
    N_pad = grid_n * nb
    total = N_pad * L

    # (N, C_in, L) -> (C_in_p, N_pad*L), zero-padded channels and batch.
    xt = jnp.transpose(x, (1, 0, 2))                                   # (C_in, N, L)
    xt = jnp.pad(xt, ((0, C_in_p - C_in), (0, N_pad - N), (0, 0)))
    x2 = xt.reshape(C_in_p, total)

    # Constant 0/1 boundary masks for the +-1 conv taps (per-sequence zero pad).
    pos = jnp.arange(total, dtype=jnp.int32) % L
    mm1 = (pos != 0).astype(jnp.float32)[None, :]
    mp1 = (pos != L - 1).astype(jnp.float32)[None, :]

    full = lambda a: pl.BlockSpec(a.shape, lambda g: (0,) * a.ndim)

    grid_spec = pltpu.PrefetchScalarGridSpec(
        num_scalar_prefetch=0,
        grid=(grid_n,),
        in_specs=[
            pl.BlockSpec((C_in_p, tile_lanes), lambda g: (0, g)),   # x
            pl.BlockSpec((1, tile_lanes), lambda g: (0, g)),        # mask: l-1 valid
            pl.BlockSpec((1, tile_lanes), lambda g: (0, g)),        # mask: l+1 valid
            full(w1f), full(b1f), full(w2f), full(b2f), full(wrf), full(brf),
        ],
        out_specs=pl.BlockSpec((C_out_p, tile_lanes), lambda g: (0, g)),
    )

    out = pl.pallas_call(
        resblock_kernel,
        out_shape=jax.ShapeDtypeStruct((C_out_p, total), jnp.float32),
        grid_spec=grid_spec,
        compiler_params=pltpu.CompilerParams(
            dimension_semantics=("parallel",),
            vmem_limit_bytes=32 * 1024 * 1024),   # explicit; headroom on v7x 64 MiB
    )(x2, mm1, mp1, w1f, b1f, w2f, b2f, wrf, brf)

    # (C_out_p, N_pad*L) -> (N, C_out, L); drop channel/batch padding.
    out = out.reshape(C_out_p, N_pad, L)[:num_outs, :N, :]
    return jnp.transpose(out, (1, 0, 2))


# ------------------------------ pure-JAX reference -----------------------------
def _gelu_ref(x):
    return jax.nn.gelu(x, approximate=False)     # exact erf, matches torch default


def _conv1d_ref(x, w, b, padding):
    out = lax.conv_general_dilated(
        x, w, window_strides=(1,), padding=[(padding, padding)],
        dimension_numbers=("NCH", "OIH", "NCH"))
    return out + b[None, :, None]


def _bn_ref(x, gamma, beta, mean, var):
    return ((x - mean[None, :, None]) / jnp.sqrt(var + BN_EPS)[None, :, None]
            * gamma[None, :, None] + beta[None, :, None])


def resblock_ref(x, raw):
    (w1, b1, g1, be1, m1, v1,
     w2, b2, g2, be2, m2, v2,
     wr, br, gr, ber, mr, vr) = raw
    y = _conv1d_ref(x, w1, b1, 1)
    y = _bn_ref(y, g1, be1, m1, v1)
    y = _gelu_ref(y)
    y = _conv1d_ref(y, w2, b2, 1)
    y = _bn_ref(y, g2, be2, m2, v2)
    sk = _conv1d_ref(x, wr, br, 0)
    sk = _bn_ref(sk, gr, ber, mr, vr)
    return _gelu_ref(sk + BETA * y)


# --------------------------------- param setup ---------------------------------
def _ceil8(n):
    return (n + 7) // 8 * 8


def _fold_bn(w, b, gamma, beta, mean, var):
    # BN(conv(x)) == (s*w) conv x + (s*b + t), s = gamma/sqrt(var+eps), t = beta - mean*s
    s = gamma / jnp.sqrt(var + BN_EPS)
    t = beta - mean * s
    return w * s[:, None, None], s * b + t


def _pack_conv3(w, b, cin_p, cout_p):
    # (C_out, C_in, 3) -> (C_out_p, 3*C_in_p); column blocks ordered
    # [k=0 -> x_{l-1}, k=1 -> x_l, k=2 -> x_{l+1}], matching taps() stacking.
    co, ci, _ = w.shape
    wp = jnp.pad(w, ((0, cout_p - co), (0, cin_p - ci), (0, 0)))
    wp = jnp.transpose(wp, (0, 2, 1)).reshape(cout_p, 3 * cin_p)
    bp = jnp.pad(b, (0, cout_p - co)).reshape(cout_p, 1)
    return wp, bp


def make_params(key, c_in, c_out):
    ks = jax.random.split(key, 18)
    f = lambda k, s, scale=0.2: scale * jax.random.normal(k, s, jnp.float32)

    w1 = f(ks[0], (c_out, c_in, 3));  b1 = f(ks[1], (c_out,))
    g1 = 1.0 + f(ks[2], (c_out,));    be1 = f(ks[3], (c_out,))
    m1 = f(ks[4], (c_out,));          v1 = 1.0 + 0.1 * jax.random.uniform(ks[5], (c_out,))

    w2 = f(ks[6], (c_out, c_out, 3)); b2 = f(ks[7], (c_out,))
    g2 = 1.0 + f(ks[8], (c_out,));    be2 = f(ks[9], (c_out,))
    m2 = f(ks[10], (c_out,));         v2 = 1.0 + 0.1 * jax.random.uniform(ks[11], (c_out,))

    wr = f(ks[12], (c_out, c_in, 1)); br = f(ks[13], (c_out,))
    gr = 1.0 + f(ks[14], (c_out,));   ber = f(ks[15], (c_out,))
    mr = f(ks[16], (c_out,));         vr = 1.0 + 0.1 * jax.random.uniform(ks[17], (c_out,))

    raw = (w1, b1, g1, be1, m1, v1,
           w2, b2, g2, be2, m2, v2,
           wr, br, gr, ber, mr, vr)

    cin_p, cout_p = _ceil8(c_in), _ceil8(c_out)

    w1f, b1f = _fold_bn(w1, b1, g1, be1, m1, v1)
    w2f, b2f = _fold_bn(w2, b2, g2, be2, m2, v2)
    wrf, brf = _fold_bn(wr, br, gr, ber, mr, vr)

    w1p, b1p = _pack_conv3(w1f, b1f, cin_p, cout_p)
    w2p, b2p = _pack_conv3(w2f, b2f, cout_p, cout_p)
    wrp = jnp.pad(wrf[:, :, 0], ((0, cout_p - c_out), (0, cin_p - c_in)))
    brp = jnp.pad(brf, (0, cout_p - c_out)).reshape(cout_p, 1)

    packed = (w1p, b1p, w2p, b2p, wrp, brp)
    return packed, raw


if __name__ == "__main__":
    N, C_IN, C_OUT, L = 2, 4, 8, 16
    key = jax.random.PRNGKey(0)
    kx, kp = jax.random.split(key)
    x = jax.random.normal(kx, (N, C_IN, L), jnp.float32)

    packed, raw = make_params(kp, C_IN, C_OUT)

    out = jax.block_until_ready(resblock_pallas(x, packed, C_OUT))

    ref = resblock_ref(x, raw)
    np.testing.assert_allclose(np.asarray(out), np.asarray(ref), rtol=1e-4, atol=1e-4)

    print("KERNEL_OK")
</pallas_src>

<mosaic_0001>
module attributes {stable_mosaic.version = 11 : i64} {
  func.func @resblock_kernel(%arg0: i32, %arg1: memref<8x128xf32, #tpu.memory_space<vmem>>, %arg2: memref<1x128xf32, #tpu.memory_space<vmem>>, %arg3: memref<1x128xf32, #tpu.memory_space<vmem>>, %arg4: memref<8x24xf32, #tpu.memory_space<vmem>>, %arg5: memref<8x1xf32, #tpu.memory_space<vmem>>, %arg6: memref<8x24xf32, #tpu.memory_space<vmem>>, %arg7: memref<8x1xf32, #tpu.memory_space<vmem>>, %arg8: memref<8x8xf32, #tpu.memory_space<vmem>>, %arg9: memref<8x1xf32, #tpu.memory_space<vmem>>, %arg10: memref<8x128xf32, #tpu.memory_space<vmem>>) attributes {dimension_semantics = [#tpu.dimension_semantics<parallel>], iteration_bounds = array<i64: 2>, scalar_prefetch = 0 : i64, scratch_operands = 0 : i64, tpu.core_type = #tpu.core_type<tc>, window_params = [{transform_indices = @transform_0, window_bounds = array<i64: 8, 128>}, {transform_indices = @transform_1, window_bounds = array<i64: 1, 128>}, {transform_indices = @transform_2, window_bounds = array<i64: 1, 128>}, {pipeline_mode = #tpu.pipeline_mode<synchronous>, transform_indices = @transform_3, window_bounds = array<i64: 8, 24>}, {pipeline_mode = #tpu.pipeline_mode<synchronous>, transform_indices = @transform_4, window_bounds = array<i64: 8, 1>}, {pipeline_mode = #tpu.pipeline_mode<synchronous>, transform_indices = @transform_5, window_bounds = array<i64: 8, 24>}, {pipeline_mode = #tpu.pipeline_mode<synchronous>, transform_indices = @transform_6, window_bounds = array<i64: 8, 1>}, {pipeline_mode = #tpu.pipeline_mode<synchronous>, transform_indices = @transform_7, window_bounds = array<i64: 8, 8>}, {pipeline_mode = #tpu.pipeline_mode<synchronous>, transform_indices = @transform_8, window_bounds = array<i64: 8, 1>}, {transform_indices = @transform_9, window_bounds = array<i64: 8, 128>}]} {
    %c0 = arith.constant 0 : index
    %c0_0 = arith.constant 0 : index
    %0 = vector.load %arg1[%c0, %c0_0] : memref<8x128xf32, #tpu.memory_space<vmem>>, vector<8x128xf32>
    %c0_1 = arith.constant 0 : index
    %c0_2 = arith.constant 0 : index
    %1 = vector.load %arg2[%c0_1, %c0_2] : memref<1x128xf32, #tpu.memory_space<vmem>>, vector<1x128xf32>
    %c0_3 = arith.constant 0 : index
    %c0_4 = arith.constant 0 : index
    %2 = vector.load %arg3[%c0_3, %c0_4] : memref<1x128xf32, #tpu.memory_space<vmem>>, vector<1x128xf32>
    %c0_5 = arith.constant 0 : index
    %c0_6 = arith.constant 0 : index
    %3 = vector.load %arg4[%c0_5, %c0_6] : memref<8x24xf32, #tpu.memory_space<vmem>>, vector<8x24xf32>
    %c1_i32 = arith.constant 1 : i32
    %4 = tpu.dynamic_rotate %0 by %c1_i32 dim 1 : vector<8x128xf32>, i32 -> vector<8x128xf32>
    %5 = vector.broadcast %1 : vector<1x128xf32> to vector<8x128xf32>
    %6 = arith.mulf %4, %5 : vector<8x128xf32>
    %c127_i32 = arith.constant 127 : i32
    %7 = tpu.dynamic_rotate %0 by %c127_i32 dim 1 : vector<8x128xf32>, i32 -> vector<8x128xf32>
    %8 = vector.broadcast %2 : vector<1x128xf32> to vector<8x128xf32>
    %9 = arith.mulf %7, %8 : vector<8x128xf32>
    %10 = tpu.concatenate %6, %0, %9 in 0 : vector<8x128xf32>, vector<8x128xf32>, vector<8x128xf32> -> vector<24x128xf32>
    %cst = arith.constant dense<0.000000e+00> : vector<8x128xf32>
    %11 = tpu.matmul %3, %10, %cst {dimension_numbers = #tpu.dot_dimension_numbers<[1], [0], [0], [1], [0, 0, 1, 1], [], []>} : vector<8x24xf32>, vector<24x128xf32>, vector<8x128xf32> -> vector<8x128xf32>
    %c0_7 = arith.constant 0 : index
    %c0_8 = arith.constant 0 : index
    %12 = vector.load %arg5[%c0_7, %c0_8] : memref<8x1xf32, #tpu.memory_space<vmem>>, vector<8x1xf32>
    %13 = vector.broadcast %12 : vector<8x1xf32> to vector<8x128xf32>
    %14 = arith.addf %11, %13 : vector<8x128xf32>
    %cst_9 = arith.constant 5.000000e-01 : f32
    %15 = vector.broadcast %cst_9 : f32 to vector<8x128xf32>
    %16 = arith.mulf %15, %14 : vector<8x128xf32>
    %cst_10 = arith.constant 0.707106769 : f32
    %17 = vector.broadcast %cst_10 : f32 to vector<8x128xf32>
    %18 = arith.mulf %14, %17 : vector<8x128xf32>
    %19 = math.absf %18 : vector<8x128xf32>
    %cst_11 = arith.constant 0.327591091 : f32
    %20 = vector.broadcast %cst_11 : f32 to vector<8x128xf32>
    %21 = arith.mulf %20, %19 : vector<8x128xf32>
    %cst_12 = arith.constant 1.000000e+00 : f32
    %22 = vector.broadcast %cst_12 : f32 to vector<8x128xf32>
    %23 = arith.addf %22, %21 : vector<8x128xf32>
    %cst_13 = arith.constant 1.000000e+00 : f32
    %24 = vector.broadcast %cst_13 : f32 to vector<8x128xf32>
    %25 = arith.divf %24, %23 : vector<8x128xf32>
    %cst_14 = arith.constant 1.06140542 : f32
    %26 = vector.broadcast %cst_14 : f32 to vector<8x128xf32>
    %27 = arith.mulf %26, %25 : vector<8x128xf32>
    %cst_15 = arith.constant -1.45315206 : f32
    %28 = vector.broadcast %cst_15 : f32 to vector<8x128xf32>
    %29 = arith.addf %27, %28 : vector<8x128xf32>
    %30 = arith.mulf %29, %25 : vector<8x128xf32>
    %cst_16 = arith.constant 1.42141378 : f32
    %31 = vector.broadcast %cst_16 : f32 to vector<8x128xf32>
    %32 = arith.addf %30, %31 : vector<8x128xf32>
    %33 = arith.mulf %32, %25 : vector<8x128xf32>
    %cst_17 = arith.constant -0.284496725 : f32
    %34 = vector.broadcast %cst_17 : f32 to vector<8x128xf32>
    %35 = arith.addf %33, %34 : vector<8x128xf32>
    %36 = arith.mulf %35, %25 : vector<8x128xf32>
    %cst_18 = arith.constant 0.254829586 : f32
    %37 = vector.broadcast %cst_18 : f32 to vector<8x128xf32>
    %38 = arith.addf %36, %37 : vector<8x128xf32>
    %39 = arith.mulf %38, %25 : vector<8x128xf32>
    %cst_19 = arith.constant 0.000000e+00 : f32
    %40 = vector.broadcast %cst_19 : f32 to vector<8x128xf32>
    %41 = arith.subf %40, %19 : vector<8x128xf32>
    %42 = arith.mulf %41, %19 : vector<8x128xf32>
    %43 = math.exp %42 : vector<8x128xf32>
    %44 = arith.mulf %39, %43 : vector<8x128xf32>
    %cst_20 = arith.constant 1.000000e+00 : f32
    %45 = vector.broadcast %cst_20 : f32 to vector<8x128xf32>
    %46 = arith.subf %45, %44 : vector<8x128xf32>
    %cst_21 = arith.constant 0.000000e+00 : f32
    %47 = vector.broadcast %cst_21 : f32 to vector<8x128xf32>
    %48 = arith.cmpf olt, %18, %47 : vector<8x128xf32>
    %cst_22 = arith.constant 0.000000e+00 : f32
    %49 = vector.broadcast %cst_22 : f32 to vector<8x128xf32>
    %50 = arith.subf %49, %46 : vector<8x128xf32>
    %51 = arith.select %48, %50, %46 : vector<8x128xi1>, vector<8x128xf32>
    %cst_23 = arith.constant 1.000000e+00 : f32
    %52 = vector.broadcast %cst_23 : f32 to vector<8x128xf32>
    %53 = arith.addf %52, %51 : vector<8x128xf32>
    %54 = arith.mulf %16, %53 : vector<8x128xf32>
    %c0_24 = arith.constant 0 : index
    %c0_25 = arith.constant 0 : index
    %55 = vector.load %arg6[%c0_24, %c0_25] : memref<8x24xf32, #tpu.memory_space<vmem>>, vector<8x24xf32>
    %c1_i32_26 = arith.constant 1 : i32
    %56 = tpu.dynamic_rotate %54 by %c1_i32_26 dim 1 : vector<8x128xf32>, i32 -> vector<8x128xf32>
    %57 = vector.broadcast %1 : vector<1x128xf32> to vector<8x128xf32>
    %58 = arith.mulf %56, %57 : vector<8x128xf32>
    %c127_i32_27 = arith.constant 127 : i32
    %59 = tpu.dynamic_rotate %54 by %c127_i32_27 dim 1 : vector<8x128xf32>, i32 -> vector<8x128xf32>
    %60 = vector.broadcast %2 : vector<1x128xf32> to vector<8x128xf32>
    %61 = arith.mulf %59, %60 : vector<8x128xf32>
    %62 = tpu.concatenate %58, %54, %61 in 0 : vector<8x128xf32>, vector<8x128xf32>, vector<8x128xf32> -> vector<24x128xf32>
    %cst_28 = arith.constant dense<0.000000e+00> : vector<8x128xf32>
    %63 = tpu.matmul %55, %62, %cst_28 {dimension_numbers = #tpu.dot_dimension_numbers<[1], [0], [0], [1], [0, 0, 1, 1], [], []>} : vector<8x24xf32>, vector<24x128xf32>, vector<8x128xf32> -> vector<8x128xf32>
    %c0_29 = arith.constant 0 : index
    %c0_30 = arith.constant 0 : index
    %64 = vector.load %arg7[%c0_29, %c0_30] : memref<8x1xf32, #tpu.memory_space<vmem>>, vector<8x1xf32>
    %65 = vector.broadcast %64 : vector<8x1xf32> to vector<8x128xf32>
    %66 = arith.addf %63, %65 : vector<8x128xf32>
    %c0_31 = arith.constant 0 : index
    %c0_32 = arith.constant 0 : index
    %67 = vector.load %arg8[%c0_31, %c0_32] : memref<8x8xf32, #tpu.memory_space<vmem>>, vector<8x8xf32>
    %cst_33 = arith.constant dense<0.000000e+00> : vector<8x128xf32>
    %68 = tpu.matmul %67, %0, %cst_33 {dimension_numbers = #tpu.dot_dimension_numbers<[1], [0], [0], [1], [0, 0, 1, 1], [], []>} : vector<8x8xf32>, vector<8x128xf32>, vector<8x128xf32> -> vector<8x128xf32>
    %c0_34 = arith.constant 0 : index
    %c0_35 = arith.constant 0 : index
    %69 = vector.load %arg9[%c0_34, %c0_35] : memref<8x1xf32, #tpu.memory_space<vmem>>, vector<8x1xf32>
    %70 = vector.broadcast %69 : vector<8x1xf32> to vector<8x128xf32>
    %71 = arith.addf %68, %70 : vector<8x128xf32>
    %72 = arith.addf %71, %66 : vector<8x128xf32>
    %cst_36 = arith.constant 5.000000e-01 : f32
    %73 = vector.broadcast %cst_36 : f32 to vector<8x128xf32>
    %74 = arith.mulf %73, %72 : vector<8x128xf32>
    %cst_37 = arith.constant 0.707106769 : f32
    %75 = vector.broadcast %cst_37 : f32 to vector<8x128xf32>
    %76 = arith.mulf %72, %75 : vector<8x128xf32>
    %77 = math.absf %76 : vector<8x128xf32>
    %cst_38 = arith.constant 0.327591091 : f32
    %78 = vector.broadcast %cst_38 : f32 to vector<8x128xf32>
    %79 = arith.mulf %78, %77 : vector<8x128xf32>
    %cst_39 = arith.constant 1.000000e+00 : f32
    %80 = vector.broadcast %cst_39 : f32 to vector<8x128xf32>
    %81 = arith.addf %80, %79 : vector<8x128xf32>
    %cst_40 = arith.constant 1.000000e+00 : f32
    %82 = vector.broadcast %cst_40 : f32 to vector<8x128xf32>
    %83 = arith.divf %82, %81 : vector<8x128xf32>
    %cst_41 = arith.constant 1.06140542 : f32
    %84 = vector.broadcast %cst_41 : f32 to vector<8x128xf32>
    %85 = arith.mulf %84, %83 : vector<8x128xf32>
    %cst_42 = arith.constant -1.45315206 : f32
    %86 = vector.broadcast %cst_42 : f32 to vector<8x128xf32>
    %87 = arith.addf %85, %86 : vector<8x128xf32>
    %88 = arith.mulf %87, %83 : vector<8x128xf32>
    %cst_43 = arith.constant 1.42141378 : f32
    %89 = vector.broadcast %cst_43 : f32 to vector<8x128xf32>
    %90 = arith.addf %88, %89 : vector<8x128xf32>
    %91 = arith.mulf %90, %83 : vector<8x128xf32>
    %cst_44 = arith.constant -0.284496725 : f32
    %92 = vector.broadcast %cst_44 : f32 to vector<8x128xf32>
    %93 = arith.addf %91, %92 : vector<8x128xf32>
    %94 = arith.mulf %93, %83 : vector<8x128xf32>
    %cst_45 = arith.constant 0.254829586 : f32
    %95 = vector.broadcast %cst_45 : f32 to vector<8x128xf32>
    %96 = arith.addf %94, %95 : vector<8x128xf32>
    %97 = arith.mulf %96, %83 : vector<8x128xf32>
    %cst_46 = arith.constant 0.000000e+00 : f32
    %98 = vector.broadcast %cst_46 : f32 to vector<8x128xf32>
    %99 = arith.subf %98, %77 : vector<8x128xf32>
    %100 = arith.mulf %99, %77 : vector<8x128xf32>
    %101 = math.exp %100 : vector<8x128xf32>
    %102 = arith.mulf %97, %101 : vector<8x128xf32>
    %cst_47 = arith.constant 1.000000e+00 : f32
    %103 = vector.broadcast %cst_47 : f32 to vector<8x128xf32>
    %104 = arith.subf %103, %102 : vector<8x128xf32>
    %cst_48 = arith.constant 0.000000e+00 : f32
    %105 = vector.broadcast %cst_48 : f32 to vector<8x128xf32>
    %106 = arith.cmpf olt, %76, %105 : vector<8x128xf32>
    %cst_49 = arith.constant 0.000000e+00 : f32
    %107 = vector.broadcast %cst_49 : f32 to vector<8x128xf32>
    %108 = arith.subf %107, %104 : vector<8x128xf32>
    %109 = arith.select %106, %108, %104 : vector<8x128xi1>, vector<8x128xf32>
    %cst_50 = arith.constant 1.000000e+00 : f32
    %110 = vector.broadcast %cst_50 : f32 to vector<8x128xf32>
    %111 = arith.addf %110, %109 : vector<8x128xf32>
    %112 = arith.mulf %74, %111 : vector<8x128xf32>
    %c0_51 = arith.constant 0 : index
    %c0_52 = arith.constant 0 : index
    %113 = vector.load %arg10[%c0_51, %c0_52] : memref<8x128xf32, #tpu.memory_space<vmem>>, vector<8x128xf32>
    tpu.vector_store %arg10[%c0_51, %c0_52], %112 {strides = array<i32>} : memref<8x128xf32, #tpu.memory_space<vmem>>, vector<8x128xf32>,
    return
  }
  func.func @transform_0(%arg0: i32) -> (i32, i32) {
    %c0_i32 = arith.constant 0 : i32
    %c0_i32_0 = arith.constant 0 : i32
    return %c0_i32, %arg0 : i32, i32
  }
  func.func @transform_1(%arg0: i32) -> (i32, i32) {
    %c0_i32 = arith.constant 0 : i32
    %c0_i32_0 = arith.constant 0 : i32
    return %c0_i32, %arg0 : i32, i32
  }
  func.func @transform_2(%arg0: i32) -> (i32, i32) {
    %c0_i32 = arith.constant 0 : i32
    %c0_i32_0 = arith.constant 0 : i32
    return %c0_i32, %arg0 : i32, i32
  }
  func.func @transform_3(%arg0: i32) -> (i32, i32) {
    %c0_i32 = arith.constant 0 : i32
    %c0_i32_0 = arith.constant 0 : i32
    %c0_i32_1 = arith.constant 0 : i32
    return %c0_i32, %c0_i32_0 : i32, i32
  }
  func.func @transform_4(%arg0: i32) -> (i32, i32) {
    %c0_i32 = arith.constant 0 : i32
    %c0_i32_0 = arith.constant 0 : i32
    %c0_i32_1 = arith.constant 0 : i32
    return %c0_i32, %c0_i32_0 : i32, i32
  }
  func.func @transform_5(%arg0: i32) -> (i32, i32) {
    %c0_i32 = arith.constant 0 : i32
    %c0_i32_0 = arith.constant 0 : i32
    %c0_i32_1 = arith.constant 0 : i32
    return %c0_i32, %c0_i32_0 : i32, i32
  }
  func.func @transform_6(%arg0: i32) -> (i32, i32) {
    %c0_i32 = arith.constant 0 : i32
    %c0_i32_0 = arith.constant 0 : i32
    %c0_i32_1 = arith.constant 0 : i32
    return %c0_i32, %c0_i32_0 : i32, i32
  }
  func.func @transform_7(%arg0: i32) -> (i32, i32) {
    %c0_i32 = arith.constant 0 : i32
    %c0_i32_0 = arith.constant 0 : i32
    %c0_i32_1 = arith.constant 0 : i32
    return %c0_i32, %c0_i32_0 : i32, i32
  }
  func.func @transform_8(%arg0: i32) -> (i32, i32) {
    %c0_i32 = arith.constant 0 : i32
    %c0_i32_0 = arith.constant 0 : i32
    %c0_i32_1 = arith.constant 0 : i32
    return %c0_i32, %c0_i32_0 : i32, i32
  }
  func.func @transform_9(%arg0: i32) -> (i32, i32) {
    %c0_i32 = arith.constant 0 : i32
    %c0_i32_0 = arith.constant 0 : i32
    return %c0_i32, %arg0 : i32, i32
  }
}

</mosaic_0001>

<llo_original>
// kernel: tpu_custom_call.1
$region0: #{tpu_custom_call.1}
  #allocation0 [shape = 'u32[]', space=smem, size = 0x4, offset = 0x4, fixed_abs, tag = 'smem constant byte address 0x4 - core index']
  #allocation1 [shape = 'u32[72,128]{1,0:T(1,128)}', space=vmem, size = 0x9000, scoped, tag = 'internal scratch']
  %s0 = inlined_call_operand.vmem [shape: f32[8,256], index: 0, kind: input, shape index: {}]
  %s1 = inlined_call_operand.hbm [shape: f32[1,256], index: 1, kind: input, shape index: {}]
  %s2 = inlined_call_operand.hbm [shape: f32[1,256], index: 2, kind: input, shape index: {}]
  %s3 = inlined_call_operand.vmem [shape: f32[8,24], index: 3, kind: input, shape index: {}]
  %s4 = inlined_call_operand.vmem [shape: f32[8,1], index: 4, kind: input, shape index: {}]
  %s5 = inlined_call_operand.hbm [shape: f32[8,24], index: 5, kind: input, shape index: {}]
  %s6 = inlined_call_operand.vmem [shape: f32[8,1], index: 6, kind: input, shape index: {}]
  %s7 = inlined_call_operand.hbm [shape: f32[8,8], index: 7, kind: input, shape index: {}]
  %s8 = inlined_call_operand.vmem [shape: f32[8,1], index: 8, kind: input, shape index: {}]
  %s9 = inlined_call_operand.hbm [shape: f32[8,256], index: 9, kind: output, shape index: {}]
  %s10 = sld [smem:[#allocation0]]
  $region85: #{tpu_custom_call.1} parent=0
    _
  %s12 = ssub.s32 1, %s10
  %s13 = scalar_select 0, %s12, %s10
  $region1: #{tpu_custom_call.1} parent=0
    #allocation2 [shape = 'u8[1024]{0}', space=vmem, size = 0x400, scoped, tag = 'input window, operand 1']
    #allocation3 [shape = 's32[2]{0}', space=sflag, size = 0x8, scoped, tag = 'scoped memory for tpu_custom_call.1']
    #allocation4 [shape = 's32[2]{0}', space=sflag, size = 0x8, scoped, tag = 'scoped memory for tpu_custom_call.1']
    #allocation5 [shape = 'u8[1024]{0}', space=vmem, size = 0x400, scoped, tag = 'input window, operand 2']
    #allocation6 [shape = 's32[2]{0}', space=sflag, size = 0x8, scoped, tag = 'scoped memory for tpu_custom_call.1']
    #allocation7 [shape = 'u8[4096]{0}', space=vmem, size = 0x1000, scoped, tag = 'input window, operand 5, single buffered']
    #allocation8 [shape = 'u8[4096]{0}', space=vmem, size = 0x1000, scoped, tag = 'input window, operand 7, single buffered']
    #allocation9 [shape = 's32[1]{0}', space=sflag, size = 0x4, scoped, tag = 'scoped memory for tpu_custom_call.1']
    #allocation10 [shape = 'u8[8192]{0}', space=vmem, size = 0x2000, scoped, tag = 'output window, operand 0']
    %14 = vsyncpa [#allocation3], 0
    %s15 = scalar_lea.sflag [#allocation3], 1
    %16 = vsyncpa %s15, 0
    %17 = vsyncpa [#allocation6], 0
    %s18 = scalar_lea.sflag [#allocation6], 1
    %19 = vsyncpa %s18, 0
    %20 = vsyncpa [#allocation9], 0
    %21 = vsyncpa [#allocation4], 0
    %s22 = scalar_lea.sflag [#allocation4], 1
    %23 = vsyncpa %s22, 0
    loop: start=0, step=1, limit=4
    $region2: #{tpu_custom_call.1} parent=1 // loop_pre_header
      _
    $region3: #{tpu_custom_call.1} parent=1 // loop_header
      %s25 = sphi 0, %s29
      %p26 = scmp.ge.s32.totalorder %s25, 4
      %s35 = sphi 0, %s37
      %s38 = sphi 0, %s35
      %s39 = sphi 0, %s38
      %s55 = sphi 0, %s39
      %s61 = sphi 0, %s63
      %s64 = sphi 0, %s61
      %s65 = sphi 0, %s64
      %s81 = sphi 0, %s65
      %s87 = sphi 0, %s89
      %s90 = sphi 0, %s87
      %s91 = sphi 0, %s90
      %s107 = sphi 0, %s91
      %s111 = sphi 0, %s111
      %s113 = sphi 0, %s111
      %s114 = sphi 0, %s113
      %s128 = sphi 0, %s114
      %s132 = sphi 0, %s132
      %s134 = sphi 0, %s132
      %s135 = sphi 0, %s134
      %s149 = sphi 0, %s135
      %s153 = sphi 0, %s153
      %s155 = sphi 0, %s153
      %s156 = sphi 0, %s155
      %s170 = sphi 0, %s156
      %s174 = sphi 0, %s174
      %s176 = sphi 0, %s174
      %s177 = sphi 0, %s176
      %s191 = sphi 0, %s177
      %s195 = sphi 0, %s195
      %s197 = sphi 0, %s195
      %s198 = sphi 0, %s197
      %s212 = sphi 0, %s198
      %s216 = sphi 0, %s216
      %s218 = sphi 0, %s216
      %s219 = sphi 0, %s218
      %s233 = sphi 0, %s219
      %s239 = sphi 0, %s241
      %s242 = sphi 0, %s239
      %s243 = sphi 0, %s242
      %s259 = sphi 0, %s243
    $region4: #{tpu_custom_call.1} parent=1 // loop_header_branch
      %28 = sbr.rel (%p26) target = $region8
    $region5: #{tpu_custom_call.1} parent=1 // loop_body
      %s30 = ssub.s32 %s25, 1
      %s31 = ssub.s32 %s25, 2
      %s32 = sadd.s32 %s25, 1
      %s33 = ssub.s32 %s25, %s32
      %p34 = scmp.eq.s32.totalorder %s33, 0
      %s36 = sadd.s32 %s35, 1
      %s37 = scalar_select %p34, %s35, %s36
      %p40 = pneg %p34
      %p41 = scmp.eq.s32.totalorder %s25, 1
      %p42 = por %p40, %p41
      %p43 = scmp.ne.s32.totalorder %s35, %s38
      %p44 = scmp.eq.s32.totalorder %s25, 0
      %p45 = por %p43, %p44
      %p46 = scmp.ne.s32.totalorder %s35, %s38
      %p47 = scmp.eq.s32.totalorder %s30, 1
      %p48 = por %p46, %p47
      %p49 = scmp.ne.s32.totalorder %s38, %s39
      %p50 = scmp.eq.s32.totalorder %s30, 0
      %p51 = por %p49, %p50
      %p52 = scmp.ne.s32.totalorder %s38, %s39
      %p53 = scmp.eq.s32.totalorder %s31, 1
      %p54 = por %p52, %p53
      %p56 = scmp.ne.s32.totalorder %s39, %s55
      %p57 = scmp.eq.s32.totalorder %s31, 0
      %p58 = por %p56, %p57
      %s59 = ssub.s32 %s25, %s32
      %p60 = scmp.eq.s32.totalorder %s59, 0
      %s62 = sadd.s32 %s61, 1
      %s63 = scalar_select %p60, %s61, %s62
      %p66 = pneg %p60
      %p67 = scmp.eq.s32.totalorder %s25, 1
      %p68 = por %p66, %p67
      %p69 = scmp.ne.s32.totalorder %s61, %s64
      %p70 = scmp.eq.s32.totalorder %s25, 0
      %p71 = por %p69, %p70
      %p72 = scmp.ne.s32.totalorder %s61, %s64
      %p73 = scmp.eq.s32.totalorder %s30, 1
      %p74 = por %p72, %p73
      %p75 = scmp.ne.s32.totalorder %s64, %s65
      %p76 = scmp.eq.s32.totalorder %s30, 0
      %p77 = por %p75, %p76
      %p78 = scmp.ne.s32.totalorder %s64, %s65
      %p79 = scmp.eq.s32.totalorder %s31, 1
      %p80 = por %p78, %p79
      %p82 = scmp.ne.s32.totalorder %s65, %s81
      %p83 = scmp.eq.s32.totalorder %s31, 0
      %p84 = por %p82, %p83
      %s85 = ssub.s32 %s25, %s32
      %p86 = scmp.eq.s32.totalorder %s85, 0
      %s88 = sadd.s32 %s87, 1
      %s89 = scalar_select %p86, %s87, %s88
      %p92 = pneg %p86
      %p93 = scmp.eq.s32.totalorder %s25, 1
      %p94 = por %p92, %p93
      %p95 = scmp.ne.s32.totalorder %s87, %s90
      %p96 = scmp.eq.s32.totalorder %s25, 0
      %p97 = por %p95, %p96
      %p98 = scmp.ne.s32.totalorder %s87, %s90
      %p99 = scmp.eq.s32.totalorder %s30, 1
      %p100 = por %p98, %p99
      %p101 = scmp.ne.s32.totalorder %s90, %s91
      %p102 = scmp.eq.s32.totalorder %s30, 0
      %p103 = por %p101, %p102
      %p104 = scmp.ne.s32.totalorder %s90, %s91
      %p105 = scmp.eq.s32.totalorder %s31, 1
      %p106 = por %p104, %p105
      %p108 = scmp.ne.s32.totalorder %s91, %s107
      %p109 = scmp.eq.s32.totalorder %s31, 0
      %p110 = por %p108, %p109
      %s112 = sadd.s32 %s111, 1
      %p115 = scmp.eq.s32.totalorder %s25, 1
      %p116 = scmp.ne.s32.totalorder %s111, %s113
      %p117 = scmp.eq.s32.totalorder %s25, 0
      %p118 = por %p116, %p117
      %p119 = scmp.ne.s32.totalorder %s111, %s113
      %p120 = scmp.eq.s32.totalorder %s30, 1
      %p121 = por %p119, %p120
      %p122 = scmp.ne.s32.totalorder %s113, %s114
      %p123 = scmp.eq.s32.totalorder %s30, 0
      %p124 = por %p122, %p123
      %p125 = scmp.ne.s32.totalorder %s113, %s114
      %p126 = scmp.eq.s32.totalorder %s31, 1
      %p127 = por %p125, %p126
      %p129 = scmp.ne.s32.totalorder %s114, %s128
      %p130 = scmp.eq.s32.totalorder %s31, 0
      %p131 = por %p129, %p130
      %s133 = sadd.s32 %s132, 1
      %p136 = scmp.eq.s32.totalorder %s25, 1
      %p137 = scmp.ne.s32.totalorder %s132, %s134
      %p138 = scmp.eq.s32.totalorder %s25, 0
      %p139 = por %p137, %p138
      %p140 = scmp.ne.s32.totalorder %s132, %s134
      %p141 = scmp.eq.s32.totalorder %s30, 1
      %p142 = por %p140, %p141
      %p143 = scmp.ne.s32.totalorder %s134, %s135
      %p144 = scmp.eq.s32.totalorder %s30, 0
      %p145 = por %p143, %p144
      %p146 = scmp.ne.s32.totalorder %s134, %s135
      %p147 = scmp.eq.s32.totalorder %s31, 1
      %p148 = por %p146, %p147
      %p150 = scmp.ne.s32.totalorder %s135, %s149
      %p151 = scmp.eq.s32.totalorder %s31, 0
      %p152 = por %p150, %p151
      %s154 = sadd.s32 %s153, 1
      %p157 = scmp.eq.s32.totalorder %s25, 1
      %p158 = scmp.ne.s32.totalorder %s153, %s155
      %p159 = scmp.eq.s32.totalorder %s25, 0
      %p160 = por %p158, %p159
      %p161 = scmp.ne.s32.totalorder %s153, %s155
      %p162 = scmp.eq.s32.totalorder %s30, 1
      %p163 = por %p161, %p162
      %p164 = scmp.ne.s32.totalorder %s155, %s156
      %p165 = scmp.eq.s32.totalorder %s30, 0
      %p166 = por %p164, %p165
      %p167 = scmp.ne.s32.totalorder %s155, %s156
      %p168 = scmp.eq.s32.totalorder %s31, 1
      %p169 = por %p167, %p168
      %p171 = scmp.ne.s32.totalorder %s156, %s170
      %p172 = scmp.eq.s32.totalorder %s31, 0
      %p173 = por %p171, %p172
      %s175 = sadd.s32 %s174, 1
      %p178 = scmp.eq.s32.totalorder %s25, 1
      %p179 = scmp.ne.s32.totalorder %s174, %s176
      %p180 = scmp.eq.s32.totalorder %s25, 0
      %p181 = por %p179, %p180
      %p182 = scmp.ne.s32.totalorder %s174, %s176
      %p183 = scmp.eq.s32.totalorder %s30, 1
      %p184 = por %p182, %p183
      %p185 = scmp.ne.s32.totalorder %s176, %s177
      %p186 = scmp.eq.s32.totalorder %s30, 0
      %p187 = por %p185, %p186
      %p188 = scmp.ne.s32.totalorder %s176, %s177
      %p189 = scmp.eq.s32.totalorder %s31, 1
      %p190 = por %p188, %p189
      %p192 = scmp.ne.s32.totalorder %s177, %s191
      %p193 = scmp.eq.s32.totalorder %s31, 0
      %p194 = por %p192, %p193
      %s196 = sadd.s32 %s195, 1
      %p199 = scmp.eq.s32.totalorder %s25, 1
      %p200 = scmp.ne.s32.totalorder %s195, %s197
      %p201 = scmp.eq.s32.totalorder %s25, 0
      %p202 = por %p200, %p201
      %p203 = scmp.ne.s32.totalorder %s195, %s197
      %p204 = scmp.eq.s32.totalorder %s30, 1
      %p205 = por %p203, %p204
      %p206 = scmp.ne.s32.totalorder %s197, %s198
      %p207 = scmp.eq.s32.totalorder %s30, 0
      %p208 = por %p206, %p207
      %p209 = scmp.ne.s32.totalorder %s197, %s198
      %p210 = scmp.eq.s32.totalorder %s31, 1
      %p211 = por %p209, %p210
      %p213 = scmp.ne.s32.totalorder %s198, %s212
      %p214 = scmp.eq.s32.totalorder %s31, 0
      %p215 = por %p213, %p214
      %s217 = sadd.s32 %s216, 1
      %p220 = scmp.eq.s32.totalorder %s25, 1
      %p221 = scmp.ne.s32.totalorder %s216, %s218
      %p222 = scmp.eq.s32.totalorder %s25, 0
      %p223 = por %p221, %p222
      %p224 = scmp.ne.s32.totalorder %s216, %s218
      %p225 = scmp.eq.s32.totalorder %s30, 1
      %p226 = por %p224, %p225
      %p227 = scmp.ne.s32.totalorder %s218, %s219
      %p228 = scmp.eq.s32.totalorder %s30, 0
      %p229 = por %p227, %p228
      %p230 = scmp.ne.s32.totalorder %s218, %s219
      %p231 = scmp.eq.s32.totalorder %s31, 1
      %p232 = por %p230, %p231
      %p234 = scmp.ne.s32.totalorder %s219, %s233
      %p235 = scmp.eq.s32.totalorder %s31, 0
      %p236 = por %p234, %p235
      %s237 = ssub.s32 %s25, %s32
      %p238 = scmp.eq.s32.totalorder %s237, 0
      %s240 = sadd.s32 %s239, 1
      %s241 = scalar_select %p238, %s239, %s240
      %p244 = pneg %p238
      %p245 = scmp.eq.s32.totalorder %s25, 1
      %p246 = por %p244, %p245
      %p247 = scmp.ne.s32.totalorder %s239, %s242
      %p248 = scmp.eq.s32.totalorder %s25, 0
      %p249 = por %p247, %p248
      %p250 = scmp.ne.s32.totalorder %s239, %s242
      %p251 = scmp.eq.s32.totalorder %s30, 1
      %p252 = por %p250, %p251
      %p253 = scmp.ne.s32.totalorder %s242, %s243
      %p254 = scmp.eq.s32.totalorder %s30, 0
      %p255 = por %p253, %p254
      %p256 = scmp.ne.s32.totalorder %s242, %s243
      %p257 = scmp.eq.s32.totalorder %s31, 1
      %p258 = por %p256, %p257
      %p260 = scmp.ne.s32.totalorder %s243, %s259
      %p261 = scmp.eq.s32.totalorder %s31, 0
      %p262 = por %p260, %p261
      %p263 = scmp.le.s32.totalorder 1, %s25
      %p264 = scmp.lt.s32.totalorder %s25, 3
      %p265 = pnand %p263, %p264
      %p266 = pneg %p265
      // Predicated region
      $region9: #{tpu_custom_call.1} parent=5 // pred_check
        _
      $region10: #{tpu_custom_call.1} parent=5 // pred_check_branch
        %268 = sbr.rel (%p265) target = $region12
      $region11: #{tpu_custom_call.1} parent=5 // pred_region
        %s269 = ssub.s32 %s25, 1
        // Predicated region
        $region13: #{tpu_custom_call.1} parent=11 // pred_check
          %p270 = pneg %p124
        $region14: #{tpu_custom_call.1} parent=11 // pred_check_branch
          %272 = sbr.rel (%p270) target = $region16
        $region15: #{tpu_custom_call.1} parent=11 // pred_region
          _
        $region16: #{tpu_custom_call.1} parent=11 // pred_fallthru
          _
        // Predicated region
        $region17: #{tpu_custom_call.1} parent=11 // pred_check
          %p273 = pneg %p145
        $region18: #{tpu_custom_call.1} parent=11 // pred_check_branch
          %275 = sbr.rel (%p273) target = $region20
        $region19: #{tpu_custom_call.1} parent=11 // pred_region
          _
        $region20: #{tpu_custom_call.1} parent=11 // pred_fallthru
          _
        // Predicated region
        $region21: #{tpu_custom_call.1} parent=11 // pred_check
          %p276 = pneg %p166
        $region22: #{tpu_custom_call.1} parent=11 // pred_check_branch
          %278 = sbr.rel (%p276) target = $region24
        $region23: #{tpu_custom_call.1} parent=11 // pred_region
          %280 = vsyncadd [#allocation6], 0
          %s282 = sshll.u32 %s5, 4
          %s283 = int_to_ptr.hbm [resolvable:$true] %s282
          %s284 = sshll.u32 [#allocation7], 4
          %s285 = int_to_ptr.vmem [resolvable:$true] %s284
          %287 = dma.hbm_to_vmem [thread:$0]  %s283, 128, %s285, [#allocation6]
        $region24: #{tpu_custom_call.1} parent=11 // pred_fallthru
          _
        // Predicated region
        $region25: #{tpu_custom_call.1} parent=11 // pred_check
          %p288 = pneg %p187
        $region26: #{tpu_custom_call.1} parent=11 // pred_check_branch
          %290 = sbr.rel (%p288) target = $region28
        $region27: #{tpu_custom_call.1} parent=11 // pred_region
          _
        $region28: #{tpu_custom_call.1} parent=11 // pred_fallthru
          _
        // Predicated region
        $region29: #{tpu_custom_call.1} parent=11 // pred_check
          %p291 = pneg %p208
        $region30: #{tpu_custom_call.1} parent=11 // pred_check_branch
          %293 = sbr.rel (%p291) target = $region32
        $region31: #{tpu_custom_call.1} parent=11 // pred_region
          %295 = vsyncadd [#allocation9], 0
          %s297 = sshll.u32 %s7, 4
          %s298 = int_to_ptr.hbm [resolvable:$true] %s297
          %s299 = sshll.u32 [#allocation8], 4
          %s300 = int_to_ptr.vmem [resolvable:$true] %s299
          %302 = dma.hbm_to_vmem [thread:$0]  %s298, 128, %s300, [#allocation9]
        $region32: #{tpu_custom_call.1} parent=11 // pred_fallthru
          _
        // Predicated region
        $region33: #{tpu_custom_call.1} parent=11 // pred_check
          %p303 = pneg %p229
        $region34: #{tpu_custom_call.1} parent=11 // pred_check_branch
          %305 = sbr.rel (%p303) target = $region36
        $region35: #{tpu_custom_call.1} parent=11 // pred_region
          _
        $region36: #{tpu_custom_call.1} parent=11 // pred_fallthru
          _
      $region12: #{tpu_custom_call.1} parent=5 // pred_fallthru
        _
      %p306 = scmp.lt.s32.totalorder %s25, 2
      // Predicated region
      $region37: #{tpu_custom_call.1} parent=5 // pred_check
        %p307 = pneg %p306
      $region38: #{tpu_custom_call.1} parent=5 // pred_check_branch
        %309 = sbr.rel (%p307) target = $region40
      $region39: #{tpu_custom_call.1} parent=5 // pred_region
        // Predicated region
        $region41: #{tpu_custom_call.1} parent=39 // pred_check
          %p310 = pneg %p45
        $region42: #{tpu_custom_call.1} parent=39 // pred_check_branch
          %312 = sbr.rel (%p310) target = $region44
        $region43: #{tpu_custom_call.1} parent=39 // pred_region
          %p313 = scmp.lt.s32.totalorder %s25, 1
          %s314 = scalar_select %p313, %s25, 1
          %s315 = smul.addr %s314, 8
          %s316 = scalar_lea.vmem %s0, %s315
        $region44: #{tpu_custom_call.1} parent=39 // pred_fallthru
          _
        // Predicated region
        $region45: #{tpu_custom_call.1} parent=39 // pred_check
          %p317 = pneg %p71
        $region46: #{tpu_custom_call.1} parent=39 // pred_check_branch
          %319 = sbr.rel (%p317) target = $region48
        $region47: #{tpu_custom_call.1} parent=39 // pred_region
          %s320 = sand.u32 %s61, 1
          %s321 = scalar_lea.sflag [#allocation3], %s320
          %s322 = sand.u32 %s61, 1
          %s323 = scalar_lea.vmem [#allocation2], %s322
          %325 = vsyncadd %s321, 0
          %s326 = scalar_lea.hbm %s1, %s25
          %s328 = sshll.u32 %s326, 4
          %s329 = int_to_ptr.hbm [resolvable:$true] %s328
          %s330 = sshll.u32 %s323, 4
          %s331 = int_to_ptr.vmem [resolvable:$true] %s330
          %333 = dma.hbm_to_vmem [thread:$0]  %s329, 16, %s331, %s321
        $region48: #{tpu_custom_call.1} parent=39 // pred_fallthru
          _
        // Predicated region
        $region49: #{tpu_custom_call.1} parent=39 // pred_check
          %p334 = pneg %p97
        $region50: #{tpu_custom_call.1} parent=39 // pred_check_branch
          %336 = sbr.rel (%p334) target = $region52
        $region51: #{tpu_custom_call.1} parent=39 // pred_region
          %s337 = sand.u32 %s25, 1
          %s338 = scalar_lea.sflag [#allocation6], %s337
          %s339 = sand.u32 %s87, 1
          %s340 = scalar_lea.vmem [#allocation5], %s339
          %342 = vsyncadd %s338, 0
          %s343 = scalar_lea.hbm %s2, %s25
          %s345 = sshll.u32 %s343, 4
          %s346 = int_to_ptr.hbm [resolvable:$true] %s345
          %s347 = sshll.u32 %s340, 4
          %s348 = int_to_ptr.vmem [resolvable:$true] %s347
          %350 = dma.hbm_to_vmem [thread:$0]  %s346, 16, %s348, %s338
        $region52: #{tpu_custom_call.1} parent=39 // pred_fallthru
          _
      $region40: #{tpu_custom_call.1} parent=5 // pred_fallthru
        _
      %p351 = scmp.le.s32.totalorder 1, %s25
      %p352 = scmp.lt.s32.totalorder %s25, 3
      %p353 = pnand %p351, %p352
      %p354 = pneg %p353
      // Predicated region
      $region53: #{tpu_custom_call.1} parent=5 // pred_check
        _
      $region54: #{tpu_custom_call.1} parent=5 // pred_check_branch
        %356 = sbr.rel (%p353) target = $region56
      $region55: #{tpu_custom_call.1} parent=5 // pred_region
        %s357 = ssub.s32 %s25, 1
        %s358 = sand.u32 %s64, 1
        %s359 = scalar_lea.sflag [#allocation3], %s358
        %s360 = sand.u32 %s64, 1
        %s361 = scalar_lea.vmem [#allocation2], %s360
        // Predicated region
        $region57: #{tpu_custom_call.1} parent=55 // pred_check
          %p362 = pneg %p77
        $region58: #{tpu_custom_call.1} parent=55 // pred_check_branch
          %364 = sbr.rel (%p362) target = $region60
        $region59: #{tpu_custom_call.1} parent=55 // pred_region
          %366 = dma.done %s359, 16
        $region60: #{tpu_custom_call.1} parent=55 // pred_fallthru
          _
        %s367 = sand.u32 %s30, 1
        %s368 = scalar_lea.sflag [#allocation6], %s367
        %s369 = sand.u32 %s90, 1
        %s370 = scalar_lea.vmem [#allocation5], %s369
        // Predicated region
        $region61: #{tpu_custom_call.1} parent=55 // pred_check
          %p371 = pneg %p103
        $region62: #{tpu_custom_call.1} parent=55 // pred_check_branch
          %373 = sbr.rel (%p371) target = $region64
        $region63: #{tpu_custom_call.1} parent=55 // pred_region
          %375 = dma.done %s368, 16
        $region64: #{tpu_custom_call.1} parent=55 // pred_fallthru
          _
        // Predicated region
        $region65: #{tpu_custom_call.1} parent=55 // pred_check
          %p376 = pneg %p166
        $region66: #{tpu_custom_call.1} parent=55 // pred_check_branch
          %378 = sbr.rel (%p376) target = $region68
        $region67: #{tpu_custom_call.1} parent=55 // pred_region
          %380 = dma.done [#allocation6], 128
        $region68: #{tpu_custom_call.1} parent=55 // pred_fallthru
          _
        // Predicated region
        $region69: #{tpu_custom_call.1} parent=55 // pred_check
          %p381 = pneg %p208
        $region70: #{tpu_custom_call.1} parent=55 // pred_check_branch
          %383 = sbr.rel (%p381) target = $region72
        $region71: #{tpu_custom_call.1} parent=55 // pred_region
          %385 = dma.done [#allocation9], 128
        $region72: #{tpu_custom_call.1} parent=55 // pred_fallthru
          _
        %p386 = scmp.lt.s32.totalorder %s30, 1
        %s387 = scalar_select %p386, %s30, 1
        %s388 = smul.addr %s387, 8
        %s389 = scalar_lea.vmem %s0, %s388
        %p390 = pneg %p51
        %p391 = pneg %p48
        %s392 = sand.u32 %s64, 1
        %s393 = scalar_lea.sflag [#allocation3], %s392
        %s394 = sand.u32 %s64, 1
        %s395 = scalar_lea.vmem [#allocation2], %s394
        %p396 = pneg %p77
        %p397 = pneg %p74
        %s398 = sand.u32 %s30, 1
        %s399 = scalar_lea.sflag [#allocation6], %s398
        %s400 = sand.u32 %s90, 1
        %s401 = scalar_lea.vmem [#allocation5], %s400
        %p402 = pneg %p103
        %p403 = pneg %p100
        %p404 = pneg %p124
        %p405 = pneg %p121
        %p406 = pneg %p145
        %p407 = pneg %p142
        %p408 = pneg %p166
        %p409 = pneg %p163
        %p410 = pneg %p187
        %p411 = pneg %p184
        %p412 = pneg %p208
        %p413 = pneg %p205
        %p414 = pneg %p229
        %p415 = pneg %p226
        %p416 = pneg %p255
        %p417 = pneg %p252
        %s418 = sand.u32 %s242, 1
        %s419 = scalar_lea.sflag [#allocation4], %s418
        %s420 = sand.u32 %s242, 1
        %s421 = smul.addr %s420, 8
        %s422 = scalar_lea.vmem [#allocation10], %s421
        %p423 = scmp.lt.s32.totalorder %s30, 1
        %s424 = scalar_select %p423, %s30, 1
        %s425 = smul.addr %s424, 8
        %s426 = scalar_lea.vmem %s0, %s425
        %v427 = vld [vmem:[%s426] sm:$0xff]
        %v428 = vld [vmem:[%s361] sm:$0x1]
        %v429 = vld [vmem:[%s370] sm:$0x1]
        %v430 = vld [vmem:[%s3] sm:$0xff]
        %431 = vrot.lane.b32.xlu0 %v427, 1
        %v432 = vpop.permute.xlu0 %431
        %v434 = vperm.slane %v428, 0
        %v436 = vmul.f32 %v432, %v434
        %437 = vrot.lane.b32.xlu0 %v427, 127
        %v438 = vpop.permute.xlu0 %437
        %v440 = vperm.slane %v429, 0
        %v442 = vmul.f32 %v438, %v440
        %v443 = vld [vmem:[%s4] sm:$0xff]
        %445 = vset.pattern.permute.xlu0 0
        %446 = vperm.xlu0 %445, %v443
        %v447 = vpop.permute.xlu0 %446
        %vm449 = vcmask 195584
        %v451 = vsel %vm449, %v430, 0
        %453 = vmatpush.msra.mxu0 0.0
        %454 = vmatpush.msra.mxu0 0.0
        %455 = vmatpush.msra.mxu0 0.0
        %456 = vmatpush.msra.mxu0 0.0
        %457 = vmatpush.msra.mxu0 0.0
        %458 = vmatpush.msra.mxu0 0.0
        %459 = vmatpush.msra.mxu0 0.0
        %460 = vmatpush.msra.mxu0 0.0
        %461 = vmatpush.msra.mxu0 0.0
        %462 = vmatpush.msra.mxu0 0.0
        %463 = vmatpush.msra.mxu0 0.0
        %464 = vmatpush.msra.mxu0 0.0
        %465 = vmatpush.msra.mxu0 0.0
        %466 = vmatpush.msra.mxu0 %v442
        %467 = vmatpush.msra.mxu0 %v427
        %468 = vmatpush.msra.mxu0 %v436
        %469 = vmatmul.f32.gmra.mxu0 %v451
        %v470 = vpop.f32.mrf.mxu0
        %v471 = vadd.f32 %v447, %v470
        %472 = vdwg.mxu0
        %v473 = vmul.f32 %v471, 0.5
        %v474 = vmul.f32 %v471, 0.70710677
        %v475 = vand.u32 2147483647, %v474
        %v476 = vmul.f32 %v475, 0.3275911
        %v477 = vadd.f32 %v476, 1.0
        %v478 = vrcp.pop %v477
        %v479 = vmul.f32 %v477, %v478
        %v480 = vsub.f32 1.0, %v479
        %v481 = vmul.f32 %v478, %v480
        %v482 = vadd.f32 %v478, %v481
        %vm483 = vweird.f32 %v477
        %vm484 = vweird.f32 %v478
        %vm485 = vmor %vm483, %vm484
        %v486 = vsel %vm485, %v478, %v482
        %v487 = vand.u32 2147483647, %v477
        %vm488 = vcmp.eq.f32.partialorder %v487, 8.507059e+37
        %v489 = vand.u32 %v477, 2147483648
        %v490 = vor.u32 1.1754944e-38, %v489
        %v491 = vsel %vm488, %v490, %v486
        %v492 = vmul.f32 1.0, %v491
        %v493 = vmul.f32 %v492, 1.0614054
        %v494 = vadd.f32 %v493, -1.4531521
        %v495 = vmul.f32 %v494, %v492
        %v496 = vadd.f32 %v495, 1.4214138
        %v497 = vmul.f32 %v496, %v492
        %v498 = vadd.f32 %v497, -0.28449672
        %v499 = vmul.f32 %v498, %v492
        %v500 = vadd.f32 %v499, 0.2548296
        %v501 = vmul.f32 %v500, %v492
        %v502 = vsub.f32 0.0, %v475
        %v503 = vmul.f32 %v502, %v475
        %v504 = vmul.f32 %v503, 1.442695
        %v505 = vpow.pop %v504
        %v506 = vmul.f32 %v501, %v505
        %v507 = vsub.f32 1.0, %v506
        %vm508 = vcmp.lt.f32.partialorder %v474, 0.0
        %v509 = vsub.f32 0.0, %v507
        %v510 = vsel %vm508, %v509, %v507
        %v511 = vadd.f32 %v510, 1.0
        %v512 = vmul.f32 %v473, %v511
        %v513 = vld [vmem:[#allocation7] sm:$0xff]
        %514 = vrot.lane.b32.xlu0 %v512, 1
        %v515 = vpop.permute.xlu0 %514
        %v516 = vmul.f32 %v515, %v434
        %517 = vrot.lane.b32.xlu0 %v512, 127
        %v518 = vpop.permute.xlu0 %517
        %v519 = vmul.f32 %v518, %v440
        %v520 = vld [vmem:[%s6] sm:$0xff]
        %522 = vset.pattern.permute.xlu0 0
        %523 = vperm.xlu0 %522, %v520
        %v524 = vpop.permute.xlu0 %523
        %v527 = vsel %vm449, %v513, 0
        %529 = vmatpush.msra.mxu0 0.0
        %530 = vmatpush.msra.mxu0 0.0
        %531 = vmatpush.msra.mxu0 0.0
        %532 = vmatpush.msra.mxu0 0.0
        %533 = vmatpush.msra.mxu0 0.0
        %534 = vmatpush.msra.mxu0 0.0
        %535 = vmatpush.msra.mxu0 0.0
        %536 = vmatpush.msra.mxu0 0.0
        %537 = vmatpush.msra.mxu0 0.0
        %538 = vmatpush.msra.mxu0 0.0
        %539 = vmatpush.msra.mxu0 0.0
        %540 = vmatpush.msra.mxu0 0.0
        %541 = vmatpush.msra.mxu0 0.0
        %542 = vmatpush.msra.mxu0 %v519
        %543 = vmatpush.msra.mxu0 %v512
        %544 = vmatpush.msra.mxu0 %v516
        %545 = vmatmul.f32.gmra.mxu0 %v527
        %v546 = vpop.f32.mrf.mxu0
        %v547 = vadd.f32 %v524, %v546
        %548 = vdwg.mxu0
        %v549 = vld [vmem:[#allocation8] sm:$0xff]
        %v550 = vld [vmem:[%s8] sm:$0xff]
        %552 = vset.pattern.permute.xlu0 0
        %553 = vperm.xlu0 %552, %v550
        %v554 = vpop.permute.xlu0 %553
        %vm556 = vcmask 64512
        %v558 = vsel %vm556, %v549, 0
        %560 = vmatpush.msra.mxu0 0.0
        %561 = vmatpush.msra.mxu0 0.0
        %562 = vmatpush.msra.mxu0 0.0
        %563 = vmatpush.msra.mxu0 0.0
        %564 = vmatpush.msra.mxu0 0.0
        %565 = vmatpush.msra.mxu0 0.0
        %566 = vmatpush.msra.mxu0 0.0
        %567 = vmatpush.msra.mxu0 0.0
        %568 = vmatpush.msra.mxu0 0.0
        %569 = vmatpush.msra.mxu0 0.0
        %570 = vmatpush.msra.mxu0 0.0
        %571 = vmatpush.msra.mxu0 0.0
        %572 = vmatpush.msra.mxu0 0.0
        %573 = vmatpush.msra.mxu0 0.0
        %574 = vmatpush.msra.mxu0 0.0
        %575 = vmatpush.msra.mxu0 %v427
        %576 = vmatmul.f32.gmra.mxu0 %v558
        %v577 = vpop.f32.mrf.mxu0
        %v578 = vadd.f32 %v554, %v577
        %579 = vdwg.mxu0
        %v580 = vadd.f32 %v578, %v547
        %v581 = vmul.f32 %v580, 0.5
        %v582 = vmul.f32 %v580, 0.70710677
        %v583 = vand.u32 2147483647, %v582
        %v584 = vmul.f32 %v583, 0.3275911
        %v585 = vadd.f32 %v584, 1.0
        %v586 = vrcp.pop %v585
        %v587 = vmul.f32 %v585, %v586
        %v588 = vsub.f32 1.0, %v587
        %v589 = vmul.f32 %v586, %v588
        %v590 = vadd.f32 %v586, %v589
        %vm591 = vweird.f32 %v585
        %vm592 = vweird.f32 %v586
        %vm593 = vmor %vm591, %vm592
        %v594 = vsel %vm593, %v586, %v590
        %v595 = vand.u32 2147483647, %v585
        %vm596 = vcmp.eq.f32.partialorder %v595, 8.507059e+37
        %v597 = vand.u32 %v585, 2147483648
        %v598 = vor.u32 1.1754944e-38, %v597
        %v599 = vsel %vm596, %v598, %v594
        %v600 = vmul.f32 1.0, %v599
        %v601 = vmul.f32 %v600, 1.0614054
        %v602 = vadd.f32 %v601, -1.4531521
        %v603 = vmul.f32 %v602, %v600
        %v604 = vadd.f32 %v603, 1.4214138
        %v605 = vmul.f32 %v604, %v600
        %v606 = vadd.f32 %v605, -0.28449672
        %v607 = vmul.f32 %v606, %v600
        %v608 = vadd.f32 %v607, 0.2548296
        %v609 = vmul.f32 %v608, %v600
        %v610 = vsub.f32 0.0, %v583
        %v611 = vmul.f32 %v610, %v583
        %v612 = vmul.f32 %v611, 1.442695
        %v613 = vpow.pop %v612
        %v614 = vmul.f32 %v609, %v613
        %v615 = vsub.f32 1.0, %v614
        %vm616 = vcmp.lt.f32.partialorder %v582, 0.0
        %v617 = vsub.f32 0.0, %v615
        %v618 = vsel %vm616, %v617, %v615
        %v619 = vadd.f32 %v618, 1.0
        %v620 = vmul.f32 %v581, %v619
        %621 = vst [vmem:[%s422] sm:$0xff] %v620
        %s622 = sand.u32 %s242, 1
        %s623 = scalar_lea.sflag [#allocation4], %s622
        %s624 = sand.u32 %s242, 1
        %s625 = smul.addr %s624, 8
        %s626 = scalar_lea.vmem [#allocation10], %s625
        // Predicated region
        $region73: #{tpu_custom_call.1} parent=55 // pred_check
          %p627 = pneg %p252
        $region74: #{tpu_custom_call.1} parent=55 // pred_check_branch
          %629 = sbr.rel (%p627) target = $region76
        $region75: #{tpu_custom_call.1} parent=55 // pred_region
          %631 = vsyncadd %s623, 0
          %s632 = smul.addr %s30, 8
          %s633 = scalar_lea.hbm %s9, %s632
          %s635 = sshll.u32 %s626, 4
          %s636 = int_to_ptr.vmem [resolvable:$true] %s635
          %s637 = sshll.u32 %s633, 4
          %s638 = int_to_ptr.hbm [resolvable:$true] %s637
          %640 = dma.vmem_to_hbm [thread:$0]  %s636, 128, %s638, %s623
        $region76: #{tpu_custom_call.1} parent=55 // pred_fallthru
          _
      $region56: #{tpu_custom_call.1} parent=5 // pred_fallthru
        _
      %p641 = scmp.le.s32.totalorder 2, %s25
      // Predicated region
      $region77: #{tpu_custom_call.1} parent=5 // pred_check
        %p642 = pneg %p641
      $region78: #{tpu_custom_call.1} parent=5 // pred_check_branch
        %644 = sbr.rel (%p642) target = $region80
      $region79: #{tpu_custom_call.1} parent=5 // pred_region
        %s645 = ssub.s32 %s25, 2
        // Predicated region
        $region81: #{tpu_custom_call.1} parent=79 // pred_check
          %p646 = pneg %p258
        $region82: #{tpu_custom_call.1} parent=79 // pred_check_branch
          %648 = sbr.rel (%p646) target = $region84
        $region83: #{tpu_custom_call.1} parent=79 // pred_region
          %s649 = sand.u32 %s243, 1
          %s650 = scalar_lea.sflag [#allocation4], %s649
          %s651 = sand.u32 %s243, 1
          %s652 = smul.addr %s651, 8
          %s653 = scalar_lea.vmem [#allocation10], %s652
          %655 = dma.done %s650, 128
        $region84: #{tpu_custom_call.1} parent=79 // pred_fallthru
          _
      $region80: #{tpu_custom_call.1} parent=5 // pred_fallthru
        _
    $region6: #{tpu_custom_call.1} parent=1 // loop_footer
      %s29 = sadd.s32 1, %s25
    $region7: #{tpu_custom_call.1} parent=1 // loop_footer_branch
      %24 = sbr.rel target = $region3
    $region8: #{tpu_custom_call.1} parent=1 // loop_exit
      _
    %656 = vsyncpa [#allocation3], 1
    %s657 = scalar_lea.sflag [#allocation3], 1
    %658 = vsyncpa %s657, 1
    %659 = vsyncpa [#allocation6], 1
    %s660 = scalar_lea.sflag [#allocation6], 1
    %661 = vsyncpa %s660, 1
    %662 = vsyncpa [#allocation9], 1
    %663 = vsyncpa [#allocation4], 1
    %s664 = scalar_lea.sflag [#allocation4], 1
    %665 = vsyncpa %s664, 1

</llo_original>
